<compile_context>
chip_gen: v7x
topology: tpu7x:2x2x1
jax: 0.10.0
libtpu: 0.0.40
codegen_flags: <defaults>
</compile_context>

<pallas_src>
import jax
import jax.numpy as jnp
from jax import lax
from jax.experimental import pallas as pl
from jax.experimental.pallas import tpu as pltpu


_MIN_GRID_STEPS = 4          # ~2 steps per TensorCore on v7x; plenty on v5e/v6e
_ROW_BLOCK_FLOOR = 512       # never shrink tiles below ~512 rows just to add steps
_TINY_BYPASS_BYTES = 32 * 1024


def _round_up(x: int, m: int) -> int:
    return ((x + m - 1) // m) * m


def _round_down(x: int, m: int) -> int:
    return max(m, (x // m) * m)


def _tpu_memory_config():
    """(target input-tile bytes, vmem_limit_bytes), picked per TPU generation."""
    try:
        vmem_cap = int(pltpu.get_tpu_info().vmem_capacity_bytes)
    except Exception:
        vmem_cap = 64 * 1024 * 1024          # conservative default (v7x-sized)
    if vmem_cap >= 100 * 1024 * 1024:        # v5e / v6e: 128 MiB physical VMEM
        return 8 * 1024 * 1024, 96 * 1024 * 1024
    return 4 * 1024 * 1024, 48 * 1024 * 1024  # v7x: 64 MiB physical VMEM


# ----------------------------------------------------------------------------
# Kernels
# ----------------------------------------------------------------------------
def _make_rows_kernel(power):
    """Full-D row block: reduce over the last (lane) axis, then rescale."""

    def kernel(x_ref, o_ref):
        # Pass 1: f32 reduction; only the (rows, 1) result stays live.
        x = x_ref[...].astype(jnp.float32)
        if power == 2:
            inv = lax.rsqrt(jnp.sum(x * x, axis=-1, keepdims=True))   # EUP rsqrt
        else:
            inv = jnp.sum(x ** power, axis=-1, keepdims=True) ** (-1.0 / power)
        # Pass 2: re-read the tile (cheap VMEM loads) so the full-tile f32
        # upcast of a bf16 input is not held live across the reduction.
        o_ref[...] = (x_ref[...].astype(jnp.float32) * inv).astype(o_ref.dtype)

    return kernel


def _make_sum_kernel(power, d_total, block_d):
    """D-tiled pass 1: accumulate sum(|x|^p) per row into a (rows, 1) output."""

    def kernel(x_ref, s_ref):
        k = pl.program_id(1)

        @pl.when(k == 0)
        def _():
            s_ref[...] = jnp.zeros_like(s_ref)

        x = x_ref[...].astype(jnp.float32)
        if d_total % block_d != 0:
            # Zero out the ragged tail columns of the last D block.
            col = k * block_d + lax.broadcasted_iota(jnp.int32, x.shape, 1)
            x = jnp.where(col < d_total, x, 0.0)
        if power == 2:
            s_ref[...] += jnp.sum(x * x, axis=-1, keepdims=True)
        else:
            s_ref[...] += jnp.sum(x ** power, axis=-1, keepdims=True)

    return kernel


def _make_scale_kernel(power):
    """D-tiled pass 2: elementwise x * sum^(-1/p)."""

    def kernel(x_ref, s_ref, o_ref):
        if power == 2:
            inv = lax.rsqrt(s_ref[...])
        else:
            inv = s_ref[...] ** (-1.0 / power)
        o_ref[...] = (x_ref[...].astype(jnp.float32) * inv).astype(o_ref.dtype)

    return kernel


# ----------------------------------------------------------------------------
# Wrappers
# ----------------------------------------------------------------------------
def _pick_block_rows(B, D, itemsize, tile_bytes):
    target = _round_down(tile_bytes // max(1, D * itemsize), 8)   # VMEM budget
    cap = _round_up(pl.cdiv(B, _MIN_GRID_STEPS), 8)               # aim for >= ~4 steps
    rows = min(target, max(cap, _ROW_BLOCK_FLOOR))                # ...but keep tiles big
    rows = min(rows, _round_up(B, 8))                             # don't exceed the array
    return max(8, _round_down(rows, 8))


def _normalize_rows(x, power, tile_bytes, vmem_limit):
    B, D = x.shape
    itemsize = jnp.dtype(x.dtype).itemsize
    block_rows = _pick_block_rows(B, D, itemsize, tile_bytes)

    return pl.pallas_call(
        _make_rows_kernel(power),
        out_shape=jax.ShapeDtypeStruct((B, D), x.dtype),
        grid_spec=pltpu.PrefetchScalarGridSpec(
            num_scalar_prefetch=0,
            grid=(pl.cdiv(B, block_rows),),
            in_specs=[pl.BlockSpec((block_rows, D), lambda i: (i, 0))],
            out_specs=pl.BlockSpec((block_rows, D), lambda i: (i, 0)),
        ),
        compiler_params=pltpu.CompilerParams(
            dimension_semantics=("parallel",),
            vmem_limit_bytes=vmem_limit,
        ),
    )(x)


def _normalize_d_tiled(x, power, tile_bytes, vmem_limit,
                       block_rows=None, block_d=None):
    """Two-pass fallback for very wide features (full-D row block won't fit)."""
    B, D = x.shape
    itemsize = jnp.dtype(x.dtype).itemsize
    if block_rows is None:
        block_rows = 8
    if block_d is None:
        block_d = max(128, _round_down(tile_bytes // (block_rows * itemsize), 128))
    block_d = min(block_d, _round_up(D, 128))
    nb = pl.cdiv(B, block_rows)
    nd = pl.cdiv(D, block_d)

    sums = pl.pallas_call(
        _make_sum_kernel(power, D, block_d),
        out_shape=jax.ShapeDtypeStruct((B, 1), jnp.float32),
        grid_spec=pltpu.PrefetchScalarGridSpec(
            num_scalar_prefetch=0,
            grid=(nb, nd),
            in_specs=[pl.BlockSpec((block_rows, block_d), lambda i, k: (i, k))],
            out_specs=pl.BlockSpec((block_rows, 1), lambda i, k: (i, 0)),
        ),
        compiler_params=pltpu.CompilerParams(
            dimension_semantics=("parallel", "arbitrary"),
            vmem_limit_bytes=vmem_limit,
        ),
    )(x)

    return pl.pallas_call(
        _make_scale_kernel(power),
        out_shape=jax.ShapeDtypeStruct((B, D), x.dtype),
        grid_spec=pltpu.PrefetchScalarGridSpec(
            num_scalar_prefetch=0,
            grid=(nb, nd),
            in_specs=[pl.BlockSpec((block_rows, block_d), lambda i, k: (i, k)),
                      pl.BlockSpec((block_rows, 1), lambda i, k: (i, 0))],
            out_specs=pl.BlockSpec((block_rows, block_d), lambda i, k: (i, k)),
        ),
        compiler_params=pltpu.CompilerParams(
            dimension_semantics=("parallel", "parallel"),
            vmem_limit_bytes=vmem_limit,
        ),
    )(x, sums)


def normalize_ref(x, power=2):
    """Pure-JAX reference matching the PyTorch forward."""
    norm = jnp.sum(x ** power, axis=1, keepdims=True) ** (1.0 / power)
    return x / norm


def normalize(x, power=2):
    """L_power-normalize rows of a (batch, features) array (PyTorch Normalize)."""
    assert x.ndim == 2, "expected (batch, features) input"
    B, D = x.shape
    itemsize = jnp.dtype(x.dtype).itemsize

    # Tiny inputs: kernel-launch / grid overhead dominates; XLA is strictly better.
    if B * D * itemsize < _TINY_BYPASS_BYTES:
        return normalize_ref(x, power)

    tile_bytes, vmem_limit = _tpu_memory_config()

    # Very wide features: even an 8-row full-D block would not fit the budget.
    if 8 * D * itemsize > tile_bytes:
        return _normalize_d_tiled(x, power, tile_bytes, vmem_limit)

    return _normalize_rows(x, power, tile_bytes, vmem_limit)


if __name__ == "__main__":
    key = jax.random.PRNGKey(0)
    k1, k2, k3, k4 = jax.random.split(key, 4)
    tile_bytes, vmem_limit = _tpu_memory_config()

    # 1) Tiny input -> pure-JAX bypass path.
    x_tiny = jax.random.normal(k1, (8, 32), dtype=jnp.float32)
    out = jax.block_until_ready(normalize(x_tiny))
    ref = normalize_ref(x_tiny)
    assert out.shape == ref.shape and out.dtype == ref.dtype
    assert jnp.allclose(out, ref, atol=1e-5, rtol=1e-5), "tiny mismatch"

    # 2) Pallas rows path: D >= 128, ragged batch (no pad/slice round-trips).
    x_wide = jax.random.normal(k2, (70, 256), dtype=jnp.float32)
    out = jax.block_until_ready(normalize(x_wide))
    ref = normalize_ref(x_wide)
    assert out.shape == ref.shape and out.dtype == ref.dtype
    assert jnp.allclose(out, ref, atol=1e-5, rtol=1e-5), "wide-D mismatch"

    # 3) Pallas rows path: small feature dim (D < 128) without any transposes.
    x_small_d = jax.random.normal(k3, (130, 96), dtype=jnp.float32)
    out = jax.block_until_ready(normalize(x_small_d))
    ref = normalize_ref(x_small_d)
    assert out.shape == ref.shape and out.dtype == ref.dtype
    assert jnp.allclose(out, ref, atol=1e-5, rtol=1e-5), "small-D mismatch"

    # 4) D-tiled fallback path, exercised directly at a small shape
    #    (ragged batch AND ragged feature blocks).
    x_dt = jax.random.normal(k4, (20, 320), dtype=jnp.float32)
    out = jax.block_until_ready(
        _normalize_d_tiled(x_dt, 2, tile_bytes, vmem_limit,
                           block_rows=8, block_d=128))
    ref = normalize_ref(x_dt)
    assert out.shape == ref.shape and out.dtype == ref.dtype
    assert jnp.allclose(out, ref, atol=1e-5, rtol=1e-5), "d-tiled mismatch"

    print("KERNEL_OK")
</pallas_src>

<mosaic_0001>
module attributes {stable_mosaic.version = 11 : i64} {
  func.func @kernel(%arg0: i32, %arg1: memref<72x256xf32, #tpu.memory_space<vmem>>, %arg2: memref<72x256xf32, #tpu.memory_space<vmem>>) attributes {dimension_semantics = [#tpu.dimension_semantics<parallel>], iteration_bounds = array<i64: 1>, scalar_prefetch = 0 : i64, scratch_operands = 0 : i64, tpu.core_type = #tpu.core_type<tc>, window_params = [{transform_indices = @transform_0, window_bounds = array<i64: 72, 256>}, {transform_indices = @transform_1, window_bounds = array<i64: 72, 256>}]} {
    %c0 = arith.constant 0 : index
    %c0_0 = arith.constant 0 : index
    %0 = vector.load %arg1[%c0, %c0_0] : memref<72x256xf32, #tpu.memory_space<vmem>>, vector<72x256xf32>
    %1 = arith.mulf %0, %0 : vector<72x256xf32>
    %cst = arith.constant dense<0.000000e+00> : vector<72xf32>
    %2 = vector.multi_reduction <add>, %1, %cst [1] : vector<72x256xf32> to vector<72xf32>
    %3 = vector.shape_cast %2 : vector<72xf32> to vector<72x1xf32>
    %4 = math.rsqrt %3 : vector<72x1xf32>
    %c0_1 = arith.constant 0 : index
    %c0_2 = arith.constant 0 : index
    %5 = vector.load %arg1[%c0_1, %c0_2] : memref<72x256xf32, #tpu.memory_space<vmem>>, vector<72x256xf32>
    %6 = vector.broadcast %4 : vector<72x1xf32> to vector<72x256xf32>
    %7 = arith.mulf %5, %6 : vector<72x256xf32>
    %c0_3 = arith.constant 0 : index
    %c0_4 = arith.constant 0 : index
    %8 = vector.load %arg2[%c0_3, %c0_4] : memref<72x256xf32, #tpu.memory_space<vmem>>, vector<72x256xf32>
    tpu.vector_store %arg2[%c0_3, %c0_4], %7 {strides = array<i32>} : memref<72x256xf32, #tpu.memory_space<vmem>>, vector<72x256xf32>,
    return
  }
  func.func @transform_0(%arg0: i32) -> (i32, i32) {
    %c0_i32 = arith.constant 0 : i32
    %c0_i32_0 = arith.constant 0 : i32
    return %arg0, %c0_i32 : i32, i32
  }
  func.func @transform_1(%arg0: i32) -> (i32, i32) {
    %c0_i32 = arith.constant 0 : i32
    %c0_i32_0 = arith.constant 0 : i32
    return %arg0, %c0_i32 : i32, i32
  }
}

</mosaic_0001>

<llo_original>
// kernel: tpu_custom_call.1
$region0: #{tpu_custom_call.1}
  #allocation0 [shape = 'u32[]', space=smem, size = 0x4, offset = 0x4, fixed_abs, tag = 'smem constant byte address 0x4 - core index']
  #allocation1 [shape = 'u32[144,128]{1,0:T(1,128)}', space=vmem, size = 0x12000, scoped, tag = 'internal scratch']
  %s0 = inlined_call_operand.hbm [shape: f32[70,256], index: 0, kind: input, shape index: {}]
  %s1 = inlined_call_operand.hbm [shape: f32[70,256], index: 1, kind: output, shape index: {}]
  %s2 = sld [smem:[#allocation0]]
  $region18: #{tpu_custom_call.1} parent=0
    _
  %s4 = ssub.s32 1, %s2
  %s5 = scalar_select 0, %s4, %s2
  $region1: #{tpu_custom_call.1} parent=0
    #allocation2 [shape = 'u8[73728]{0}', space=vmem, size = 0x12000, scoped, tag = 'input window, operand 0, single buffered']
    #allocation3 [shape = 's32[1]{0}', space=sflag, size = 0x4, scoped, tag = 'scoped memory for tpu_custom_call.1']
    #allocation4 [shape = 's32[1]{0}', space=sflag, size = 0x4, scoped, tag = 'scoped memory for tpu_custom_call.1']
    #allocation5 [shape = 'u8[73728]{0}', space=vmem, size = 0x12000, scoped, tag = 'output window, operand 0, single buffered']
    %6 = vsyncpa [#allocation3], 0
    %7 = vsyncpa [#allocation4], 0
    // Predicated region
    $region2: #{tpu_custom_call.1} parent=1 // pred_check
      _
    $region3: #{tpu_custom_call.1} parent=1 // pred_check_branch
      %9 = sbr.rel (0) target = $region5
    $region4: #{tpu_custom_call.1} parent=1 // pred_region
      %s11 = ssub.s32 2304, 2304
      %12 = vsyncadd [#allocation3], %s11
      %s13 = sshll.u32 [#allocation2], 4
      %s14 = int_to_ptr.vmem [resolvable:$true] %s13
      %19 = dma.hbm_to_vmem [thread:$0]  %s0, 2304, %s14, [#allocation3], 256, 256, 16
    $region5: #{tpu_custom_call.1} parent=1 // pred_fallthru
      _
    // Predicated region
    $region6: #{tpu_custom_call.1} parent=1 // pred_check
      _
    $region7: #{tpu_custom_call.1} parent=1 // pred_check_branch
      %21 = sbr.rel (0) target = $region9
    $region8: #{tpu_custom_call.1} parent=1 // pred_region
      %22 = dma.done [#allocation3], 2304
    $region9: #{tpu_custom_call.1} parent=1 // pred_fallthru
      _
    %v23 = vld [vmem:[#allocation2] sm:$0xff]
    %v24 = vld [vmem:[#allocation2 + $0x8] sm:$0xff]
    %v25 = vld [vmem:[#allocation2 + $0x10] sm:$0xff]
    %v26 = vld [vmem:[#allocation2 + $0x18] sm:$0xff]
    %v27 = vld [vmem:[#allocation2 + $0x20] sm:$0xff]
    %v28 = vld [vmem:[#allocation2 + $0x28] sm:$0xff]
    %v29 = vld [vmem:[#allocation2 + $0x30] sm:$0xff]
    %v30 = vld [vmem:[#allocation2 + $0x38] sm:$0xff]
    %v31 = vld [vmem:[#allocation2 + $0x40] sm:$0xff]
    %v32 = vld [vmem:[#allocation2 + $0x48] sm:$0xff]
    %v33 = vld [vmem:[#allocation2 + $0x50] sm:$0xff]
    %v34 = vld [vmem:[#allocation2 + $0x58] sm:$0xff]
    %v35 = vld [vmem:[#allocation2 + $0x60] sm:$0xff]
    %v36 = vld [vmem:[#allocation2 + $0x68] sm:$0xff]
    %v37 = vld [vmem:[#allocation2 + $0x70] sm:$0xff]
    %v38 = vld [vmem:[#allocation2 + $0x78] sm:$0xff]
    %v39 = vld [vmem:[#allocation2 + $0x80] sm:$0xff]
    %v40 = vld [vmem:[#allocation2 + $0x88] sm:$0xff]
    %v41 = vmul.f32 %v23, %v23
    %v42 = vmul.f32 %v24, %v24
    %v43 = vmul.f32 %v25, %v25
    %v44 = vmul.f32 %v26, %v26
    %v45 = vmul.f32 %v27, %v27
    %v46 = vmul.f32 %v28, %v28
    %v47 = vmul.f32 %v29, %v29
    %v48 = vmul.f32 %v30, %v30
    %v49 = vmul.f32 %v31, %v31
    %v50 = vmul.f32 %v32, %v32
    %v51 = vmul.f32 %v33, %v33
    %v52 = vmul.f32 %v34, %v34
    %v53 = vmul.f32 %v35, %v35
    %v54 = vmul.f32 %v36, %v36
    %v55 = vmul.f32 %v37, %v37
    %v56 = vmul.f32 %v38, %v38
    %v57 = vmul.f32 %v39, %v39
    %v58 = vmul.f32 %v40, %v40
    %v59 = vadd.f32 %v41, %v42
    %60 = vadd.xlane.f32.xlu0 %v59
    %v61 = vpop.xlane.xlu0 %60
    %v62 = vadd.f32 %v43, %v44
    %63 = vadd.xlane.f32.xlu0 %v62
    %v64 = vpop.xlane.xlu0 %63
    %v65 = vadd.f32 %v45, %v46
    %66 = vadd.xlane.f32.xlu0 %v65
    %v67 = vpop.xlane.xlu0 %66
    %v68 = vadd.f32 %v47, %v48
    %69 = vadd.xlane.f32.xlu0 %v68
    %v70 = vpop.xlane.xlu0 %69
    %v71 = vadd.f32 %v49, %v50
    %72 = vadd.xlane.f32.xlu0 %v71
    %v73 = vpop.xlane.xlu0 %72
    %v74 = vadd.f32 %v51, %v52
    %75 = vadd.xlane.f32.xlu0 %v74
    %v76 = vpop.xlane.xlu0 %75
    %v77 = vadd.f32 %v53, %v54
    %78 = vadd.xlane.f32.xlu0 %v77
    %v79 = vpop.xlane.xlu0 %78
    %v80 = vadd.f32 %v55, %v56
    %81 = vadd.xlane.f32.xlu0 %v80
    %v82 = vpop.xlane.xlu0 %81
    %v83 = vadd.f32 %v57, %v58
    %84 = vadd.xlane.f32.xlu0 %v83
    %v85 = vpop.xlane.xlu0 %84
    %v86 = vrsqrt.pop %v61
    %v87 = vrsqrt.pop %v64
    %v88 = vrsqrt.pop %v67
    %v89 = vrsqrt.pop %v70
    %v90 = vrsqrt.pop %v73
    %v91 = vrsqrt.pop %v76
    %v92 = vrsqrt.pop %v79
    %v93 = vrsqrt.pop %v82
    %v94 = vrsqrt.pop %v85
    %v95 = vmul.f32 %v23, %v86
    %v96 = vmul.f32 %v24, %v86
    %v97 = vmul.f32 %v25, %v87
    %v98 = vmul.f32 %v26, %v87
    %v99 = vmul.f32 %v27, %v88
    %v100 = vmul.f32 %v28, %v88
    %v101 = vmul.f32 %v29, %v89
    %v102 = vmul.f32 %v30, %v89
    %v103 = vmul.f32 %v31, %v90
    %v104 = vmul.f32 %v32, %v90
    %v105 = vmul.f32 %v33, %v91
    %v106 = vmul.f32 %v34, %v91
    %v107 = vmul.f32 %v35, %v92
    %v108 = vmul.f32 %v36, %v92
    %v109 = vmul.f32 %v37, %v93
    %v110 = vmul.f32 %v38, %v93
    %v111 = vmul.f32 %v39, %v94
    %v112 = vmul.f32 %v40, %v94
    %113 = vst [vmem:[#allocation5] sm:$0xff] %v95
    %114 = vst [vmem:[#allocation5 + $0x8] sm:$0xff] %v96
    %115 = vst [vmem:[#allocation5 + $0x10] sm:$0xff] %v97
    %116 = vst [vmem:[#allocation5 + $0x18] sm:$0xff] %v98
    %117 = vst [vmem:[#allocation5 + $0x20] sm:$0xff] %v99
    %118 = vst [vmem:[#allocation5 + $0x28] sm:$0xff] %v100
    %119 = vst [vmem:[#allocation5 + $0x30] sm:$0xff] %v101
    %120 = vst [vmem:[#allocation5 + $0x38] sm:$0xff] %v102
    %121 = vst [vmem:[#allocation5 + $0x40] sm:$0xff] %v103
    %122 = vst [vmem:[#allocation5 + $0x48] sm:$0xff] %v104
    %123 = vst [vmem:[#allocation5 + $0x50] sm:$0xff] %v105
    %124 = vst [vmem:[#allocation5 + $0x58] sm:$0xff] %v106
    %125 = vst [vmem:[#allocation5 + $0x60] sm:$0xff] %v107
    %126 = vst [vmem:[#allocation5 + $0x68] sm:$0xff] %v108
    %127 = vst [vmem:[#allocation5 + $0x70] sm:$0xff] %v109
    %128 = vst [vmem:[#allocation5 + $0x78] sm:$0xff] %v110
    %129 = vst [vmem:[#allocation5 + $0x80] sm:$0xff] %v111
    %130 = vst [vmem:[#allocation5 + $0x88] sm:$0xff] %v112
    // Predicated region
    $region10: #{tpu_custom_call.1} parent=1 // pred_check
      _
    $region11: #{tpu_custom_call.1} parent=1 // pred_check_branch
      %132 = sbr.rel (0) target = $region13
    $region12: #{tpu_custom_call.1} parent=1 // pred_region
      %s134 = ssub.s32 2304, 2304
      %135 = vsyncadd [#allocation4], %s134
      %s136 = sshll.u32 [#allocation5], 4
      %s137 = int_to_ptr.vmem [resolvable:$true] %s136
      %142 = dma.vmem_to_hbm [thread:$0]  %s137, 2304, %s1, [#allocation4], 256, 256, 16
    $region13: #{tpu_custom_call.1} parent=1 // pred_fallthru
      _
    // Predicated region
    $region14: #{tpu_custom_call.1} parent=1 // pred_check
      _
    $region15: #{tpu_custom_call.1} parent=1 // pred_check_branch
      %144 = sbr.rel (0) target = $region17
    $region16: #{tpu_custom_call.1} parent=1 // pred_region
      %145 = dma.done [#allocation4], 2304
    $region17: #{tpu_custom_call.1} parent=1 // pred_fallthru
      _
    %146 = vsyncpa [#allocation3], 1
    %147 = vsyncpa [#allocation4], 1

</llo_original>
